<compile_context>
chip_gen: v7x
topology: tpu7x:2x2x1
jax: 0.10.0
libtpu: 0.0.40
codegen_flags: <defaults>
</compile_context>

<pallas_src>
import jax
import jax.numpy as jnp
from jax.experimental import pallas as pl
from jax.experimental.pallas import tpu as pltpu


def _round_up(x, m):
    return (x + m - 1) // m * m


def _make_kernel(inv_hw):
    def kernel(patches_ref, cw_ref, cb_ref, ww_ref, wb_ref, out_ref, feat_acc):
        # patches_ref: (B, ts, Kp) bf16 im2col patches (lane-dense, K zero-padded)
        # cw_ref     : (Kp, Cp)    bf16 conv weight
        # cb_ref     : (1, Cp)     f32  conv bias (zero-padded)
        # ww_ref     : (Cp, Tp)    bf16 classifier weight (unscaled)
        # wb_ref     : (1, Tp)     f32  classifier bias (zero-padded)
        # out_ref    : (B, Tp)     f32  logits (lane-dense)
        # feat_acc   : (B, Cp)     f32  VMEM scratch: running sum-pooled features
        s = pl.program_id(0)
        B, ts, Kp = patches_ref.shape
        Cp = cw_ref.shape[-1]

        @pl.when(s == 0)
        def _():
            feat_acc[...] = jnp.zeros_like(feat_acc)

        # Convolution as ONE im2col MXU matmul over all batches (bf16 in, f32 acc).
        p = patches_ref[...].reshape(B * ts, Kp)
        conv = jnp.dot(p, cw_ref[...], preferred_element_type=jnp.float32)  # (B*ts, Cp)
        conv = jnp.maximum(conv + cb_ref[...], 0.0)                         # bias + ReLU
        feat_acc[...] += conv.reshape(B, ts, Cp).sum(axis=1)                # sum-pool per batch

        @pl.when(s == pl.num_programs(0) - 1)
        def _():
            # mean-pool in f32 (keeps values O(1)), then one batched head matmul.
            feats = (feat_acc[...] * inv_hw).astype(jnp.bfloat16)           # (B, Cp)
            logits = jnp.dot(feats, ww_ref[...],
                             preferred_element_type=jnp.float32)            # (B, Tp)
            out_ref[...] = (logits + wb_ref[...]).astype(out_ref.dtype)

    return kernel


def image_classifier_forward(x_nchw, conv_w, conv_b, clf_w, clf_b, *, spatial_tile=2048):
    """x_nchw: (B, Cin, H, W) f32; conv_w: (KH, KW, Cin, Cout) HWIO; clf_w: (Cout, T)
    (i.e. nn.Linear.weight transposed). Returns logits (B, T) f32."""
    B, Cin, H, W = x_nchw.shape
    KH, KW, _, Cout = conv_w.shape
    assert KH % 2 == 1 and KW % 2 == 1, "SAME padding here assumes odd kernel sizes"
    T = clf_w.shape[1]
    HW = H * W
    K = KH * KW * Cin

    # ---- wrapper glue (plain JAX, fused by XLA) --------------------------------
    # NCHW -> NHWC, SAME padding, im2col so the conv is a single lane-dense matmul.
    x_nhwc = jnp.transpose(x_nchw, (0, 2, 3, 1))
    ph, pw = KH // 2, KW // 2
    x_pad = jnp.pad(x_nhwc, ((0, 0), (ph, ph), (pw, pw), (0, 0)))
    patches = jnp.concatenate(
        [x_pad[:, kh:kh + H, kw:kw + W, :] for kh in range(KH) for kw in range(KW)],
        axis=-1,
    ).reshape(B, HW, K)

    # Lane-dense zero padding (exact no-op on results: padded weight rows are zero).
    Kp = _round_up(K, 128)
    Cp = _round_up(Cout, 128)
    Tp = _round_up(T, 128)

    patches_p = jnp.zeros((B, HW, Kp), jnp.bfloat16).at[:, :, :K].set(
        patches.astype(jnp.bfloat16))
    cw = jnp.zeros((Kp, Cp), jnp.bfloat16).at[:K, :Cout].set(
        conv_w.reshape(K, Cout).astype(jnp.bfloat16))
    cb = jnp.zeros((1, Cp), jnp.float32).at[:, :Cout].set(conv_b.astype(jnp.float32))
    ww = jnp.zeros((Cp, Tp), jnp.bfloat16).at[:Cout, :T].set(clf_w.astype(jnp.bfloat16))
    wb = jnp.zeros((1, Tp), jnp.float32).at[:, :T].set(clf_b.astype(jnp.float32))

    # Big spatial tiles; for the demo HW=256 this is a SINGLE grid step.
    ts = HW if HW <= spatial_tile else spatial_tile
    assert HW % ts == 0, "spatial tile must divide H*W"
    assert ts == HW or ts % 8 == 0, "partial spatial tile must be 8-aligned"
    grid = (HW // ts,)

    # Right-sized VMEM reservation (v7x has 64 MiB physical VMEM).
    patches_blk = B * ts * Kp * 2
    weights = Kp * Cp * 2 + Cp * 4 + Cp * Tp * 2 + Tp * 4
    est = 2 * patches_blk + 2 * (weights + B * Tp * 4) + B * Cp * 4 + (1 << 20)
    vmem_limit = int(min(64 * 1024 * 1024, max(4 * 1024 * 1024, est)))

    out = pl.pallas_call(
        _make_kernel(1.0 / float(HW)),
        out_shape=jax.ShapeDtypeStruct((B, Tp), jnp.float32),
        grid_spec=pltpu.PrefetchScalarGridSpec(
            num_scalar_prefetch=0,
            grid=grid,
            in_specs=[
                pl.BlockSpec((B, ts, Kp), lambda s: (0, s, 0)),   # patches
                pl.BlockSpec((Kp, Cp), lambda s: (0, 0)),         # conv weight
                pl.BlockSpec((1, Cp), lambda s: (0, 0)),          # conv bias
                pl.BlockSpec((Cp, Tp), lambda s: (0, 0)),         # clf weight
                pl.BlockSpec((1, Tp), lambda s: (0, 0)),          # clf bias
            ],
            out_specs=pl.BlockSpec((B, Tp), lambda s: (0, 0)),
            scratch_shapes=[pltpu.VMEM((B, Cp), jnp.float32)],
        ),
        compiler_params=pltpu.CompilerParams(
            dimension_semantics=("arbitrary",),   # spatial reduction axis
            vmem_limit_bytes=vmem_limit,
        ),
    )(patches_p, cw, cb, ww, wb)

    return out[:, :T]


def _reference_forward(x_nchw, conv_w, conv_b, clf_w, clf_b):
    """Pure-JAX f32 reference mirroring the PyTorch semantics."""
    x_nhwc = jnp.transpose(x_nchw, (0, 2, 3, 1))
    y = jax.lax.conv_general_dilated(
        x_nhwc, conv_w, window_strides=(1, 1), padding="SAME",
        dimension_numbers=("NHWC", "HWIO", "NHWC"),
    ) + conv_b
    y = jnp.maximum(y, 0.0)
    feats = y.mean(axis=(1, 2))
    return feats @ clf_w + clf_b


if __name__ == "__main__":
    key = jax.random.PRNGKey(0)
    k_x, k_cw, k_cb, k_ww, k_wb = jax.random.split(key, 5)

    B, Cin, H, W = 2, 4, 16, 16        # input image batch (NCHW, like PyTorch)
    feature_dim = 32                   # backbone feature_dim
    num_targets = 10                   # cfg.model.vision.num_targets
    KH = KW = 3

    x = jax.random.normal(k_x, (B, Cin, H, W), jnp.float32)
    conv_w = jax.random.normal(k_cw, (KH, KW, Cin, feature_dim), jnp.float32) * 0.1
    conv_b = jax.random.normal(k_cb, (feature_dim,), jnp.float32) * 0.1
    clf_w = jax.random.normal(k_ww, (feature_dim, num_targets), jnp.float32) * 0.1
    clf_b = jax.random.normal(k_wb, (num_targets,), jnp.float32) * 0.1

    logits = image_classifier_forward(x, conv_w, conv_b, clf_w, clf_b)
    jax.block_until_ready(logits)

    ref = _reference_forward(x, conv_w, conv_b, clf_w, clf_b)
    assert logits.shape == (B, num_targets)
    # bf16 MXU operands vs f32 reference (pooling/mean now kept in f32).
    assert jnp.allclose(logits, ref, atol=1e-2, rtol=1e-2), (logits, ref)

    print("KERNEL_OK")
</pallas_src>

<mosaic_0001>
module attributes {stable_mosaic.version = 11 : i64} {
  func.func @kernel(%arg0: i32, %arg1: memref<2x256x128xbf16, #tpu.memory_space<vmem>>, %arg2: memref<128x128xbf16, #tpu.memory_space<vmem>>, %arg3: memref<1x128xf32, #tpu.memory_space<vmem>>, %arg4: memref<128x128xbf16, #tpu.memory_space<vmem>>, %arg5: memref<1x128xf32, #tpu.memory_space<vmem>>, %arg6: memref<2x128xf32, #tpu.memory_space<vmem>>, %arg7: memref<2x128xf32, #tpu.memory_space<vmem>>) attributes {dimension_semantics = [#tpu.dimension_semantics<arbitrary>], iteration_bounds = array<i64: 1>, scalar_prefetch = 0 : i64, scratch_operands = 1 : i64, tpu.core_type = #tpu.core_type<tc>, window_params = [{transform_indices = @transform_0, window_bounds = array<i64: 2, 256, 128>}, {pipeline_mode = #tpu.pipeline_mode<synchronous>, transform_indices = @transform_1, window_bounds = array<i64: 128, 128>}, {pipeline_mode = #tpu.pipeline_mode<synchronous>, transform_indices = @transform_2, window_bounds = array<i64: 1, 128>}, {pipeline_mode = #tpu.pipeline_mode<synchronous>, transform_indices = @transform_3, window_bounds = array<i64: 128, 128>}, {pipeline_mode = #tpu.pipeline_mode<synchronous>, transform_indices = @transform_4, window_bounds = array<i64: 1, 128>}, {pipeline_mode = #tpu.pipeline_mode<synchronous>, transform_indices = @transform_5, window_bounds = array<i64: 2, 128>}]} {
    %c0_i32 = arith.constant 0 : i32
    %0 = arith.cmpi eq, %arg0, %c0_i32 : i32
    %1 = arith.extui %0 : i1 to i32
    %c0_i32_0 = arith.constant 0 : i32
    %2 = arith.cmpi ne, %1, %c0_i32_0 : i32
    scf.if %2 {
      %cst_15 = arith.constant 0.000000e+00 : f32
      %20 = vector.broadcast %cst_15 : f32 to vector<2x128xf32>
      %c0_16 = arith.constant 0 : index
      %c0_17 = arith.constant 0 : index
      %21 = vector.load %arg7[%c0_16, %c0_17] : memref<2x128xf32, #tpu.memory_space<vmem>>, vector<2x128xf32>
      tpu.vector_store %arg7[%c0_16, %c0_17], %20 {strides = array<i32>} : memref<2x128xf32, #tpu.memory_space<vmem>>, vector<2x128xf32>,
    } else {
    }
    %c0 = arith.constant 0 : index
    %c0_1 = arith.constant 0 : index
    %c0_2 = arith.constant 0 : index
    %3 = vector.load %arg1[%c0, %c0_1, %c0_2] : memref<2x256x128xbf16, #tpu.memory_space<vmem>>, vector<2x256x128xbf16>
    %4 = vector.shape_cast %3 : vector<2x256x128xbf16> to vector<512x128xbf16>
    %c0_3 = arith.constant 0 : index
    %c0_4 = arith.constant 0 : index
    %5 = vector.load %arg2[%c0_3, %c0_4] : memref<128x128xbf16, #tpu.memory_space<vmem>>, vector<128x128xbf16>
    %cst = arith.constant dense<0.000000e+00> : vector<512x128xf32>
    %6 = tpu.matmul %4, %5, %cst {dimension_numbers = #tpu.dot_dimension_numbers<[1], [0], [0], [1], [0, 0, 1, 1], [], []>} : vector<512x128xbf16>, vector<128x128xbf16>, vector<512x128xf32> -> vector<512x128xf32>
    %c0_5 = arith.constant 0 : index
    %c0_6 = arith.constant 0 : index
    %7 = vector.load %arg3[%c0_5, %c0_6] : memref<1x128xf32, #tpu.memory_space<vmem>>, vector<1x128xf32>
    %8 = vector.broadcast %7 : vector<1x128xf32> to vector<512x128xf32>
    %9 = arith.addf %6, %8 : vector<512x128xf32>
    %cst_7 = arith.constant 0.000000e+00 : f32
    %10 = vector.broadcast %cst_7 : f32 to vector<512x128xf32>
    %11 = arith.maximumf %9, %10 : vector<512x128xf32>
    %c0_8 = arith.constant 0 : index
    %c0_9 = arith.constant 0 : index
    %12 = vector.load %arg7[%c0_8, %c0_9] : memref<2x128xf32, #tpu.memory_space<vmem>>, vector<2x128xf32>
    %13 = vector.shape_cast %11 : vector<512x128xf32> to vector<2x256x128xf32>
    %cst_10 = arith.constant dense<0.000000e+00> : vector<2x128xf32>
    %14 = vector.multi_reduction <add>, %13, %cst_10 [1] : vector<2x256x128xf32> to vector<2x128xf32>
    %15 = arith.addf %12, %14 : vector<2x128xf32>
    %c0_11 = arith.constant 0 : index
    %c0_12 = arith.constant 0 : index
    %16 = vector.load %arg7[%c0_11, %c0_12] : memref<2x128xf32, #tpu.memory_space<vmem>>, vector<2x128xf32>
    tpu.vector_store %arg7[%c0_11, %c0_12], %15 {strides = array<i32>} : memref<2x128xf32, #tpu.memory_space<vmem>>, vector<2x128xf32>,
    %c0_i32_13 = arith.constant 0 : i32
    %17 = arith.cmpi eq, %arg0, %c0_i32_13 : i32
    %18 = arith.extui %17 : i1 to i32
    %c0_i32_14 = arith.constant 0 : i32
    %19 = arith.cmpi ne, %18, %c0_i32_14 : i32
    scf.if %19 {
      %c0_15 = arith.constant 0 : index
      %c0_16 = arith.constant 0 : index
      %20 = vector.load %arg7[%c0_15, %c0_16] : memref<2x128xf32, #tpu.memory_space<vmem>>, vector<2x128xf32>
      %cst_17 = arith.constant 3.906250e-03 : f32
      %21 = vector.broadcast %cst_17 : f32 to vector<2x128xf32>
      %22 = arith.mulf %20, %21 : vector<2x128xf32>
      %23 = arith.truncf %22 : vector<2x128xf32> to vector<2x128xbf16>
      %c0_18 = arith.constant 0 : index
      %c0_19 = arith.constant 0 : index
      %24 = vector.load %arg4[%c0_18, %c0_19] : memref<128x128xbf16, #tpu.memory_space<vmem>>, vector<128x128xbf16>
      %cst_20 = arith.constant dense<0.000000e+00> : vector<2x128xf32>
      %25 = tpu.matmul %23, %24, %cst_20 {dimension_numbers = #tpu.dot_dimension_numbers<[1], [0], [0], [1], [0, 0, 1, 1], [], []>} : vector<2x128xbf16>, vector<128x128xbf16>, vector<2x128xf32> -> vector<2x128xf32>
      %c0_21 = arith.constant 0 : index
      %c0_22 = arith.constant 0 : index
      %26 = vector.load %arg5[%c0_21, %c0_22] : memref<1x128xf32, #tpu.memory_space<vmem>>, vector<1x128xf32>
      %27 = vector.broadcast %26 : vector<1x128xf32> to vector<2x128xf32>
      %28 = arith.addf %25, %27 : vector<2x128xf32>
      %c0_23 = arith.constant 0 : index
      %c0_24 = arith.constant 0 : index
      %29 = vector.load %arg6[%c0_23, %c0_24] : memref<2x128xf32, #tpu.memory_space<vmem>>, vector<2x128xf32>
      tpu.vector_store %arg6[%c0_23, %c0_24], %28 {strides = array<i32>} : memref<2x128xf32, #tpu.memory_space<vmem>>, vector<2x128xf32>,
    } else {
    }
    return
  }
  func.func @transform_0(%arg0: i32) -> (i32, i32, i32) {
    %c0_i32 = arith.constant 0 : i32
    %c0_i32_0 = arith.constant 0 : i32
    %c0_i32_1 = arith.constant 0 : i32
    return %c0_i32, %arg0, %c0_i32_0 : i32, i32, i32
  }
  func.func @transform_1(%arg0: i32) -> (i32, i32) {
    %c0_i32 = arith.constant 0 : i32
    %c0_i32_0 = arith.constant 0 : i32
    %c0_i32_1 = arith.constant 0 : i32
    return %c0_i32, %c0_i32_0 : i32, i32
  }
  func.func @transform_2(%arg0: i32) -> (i32, i32) {
    %c0_i32 = arith.constant 0 : i32
    %c0_i32_0 = arith.constant 0 : i32
    %c0_i32_1 = arith.constant 0 : i32
    return %c0_i32, %c0_i32_0 : i32, i32
  }
  func.func @transform_3(%arg0: i32) -> (i32, i32) {
    %c0_i32 = arith.constant 0 : i32
    %c0_i32_0 = arith.constant 0 : i32
    %c0_i32_1 = arith.constant 0 : i32
    return %c0_i32, %c0_i32_0 : i32, i32
  }
  func.func @transform_4(%arg0: i32) -> (i32, i32) {
    %c0_i32 = arith.constant 0 : i32
    %c0_i32_0 = arith.constant 0 : i32
    %c0_i32_1 = arith.constant 0 : i32
    return %c0_i32, %c0_i32_0 : i32, i32
  }
  func.func @transform_5(%arg0: i32) -> (i32, i32) {
    %c0_i32 = arith.constant 0 : i32
    %c0_i32_0 = arith.constant 0 : i32
    %c0_i32_1 = arith.constant 0 : i32
    return %c0_i32, %c0_i32_0 : i32, i32
  }
}

</mosaic_0001>

<llo_original>
// kernel: tpu_custom_call.1
$region0: #{tpu_custom_call.1}
  #allocation0 [shape = 'u32[]', space=smem, size = 0x4, offset = 0x4, fixed_abs, tag = 'smem constant byte address 0x4 - core index']
  #allocation1 [shape = 'u32[144,128]{1,0:T(1,128)}', space=vmem, size = 0x12000, scoped, tag = 'internal scratch']
  #allocation2 [shape = 'f32[2,128]{1,0:T(2,128)}', space=vmem, size = 0x400, scoped, tag = 'scratch operand']
  %s0 = inlined_call_operand.hbm [shape: bf16[2,256,128], index: 0, kind: input, shape index: {}]
  %s1 = inlined_call_operand.hbm [shape: bf16[128,128], index: 1, kind: input, shape index: {}]
  %s2 = inlined_call_operand.vmem [shape: f32[1,128], index: 2, kind: input, shape index: {}]
  %s3 = inlined_call_operand.hbm [shape: bf16[128,128], index: 3, kind: input, shape index: {}]
  %s4 = inlined_call_operand.vmem [shape: f32[1,128], index: 4, kind: input, shape index: {}]
  %s5 = inlined_call_operand.hbm [shape: f32[2,128], index: 5, kind: output, shape index: {}]
  %s6 = sld [smem:[#allocation0]]
  $region50: #{tpu_custom_call.1} parent=0
    _
  %s8 = ssub.s32 1, %s6
  %s9 = scalar_select 0, %s8, %s6
  $region1: #{tpu_custom_call.1} parent=0
    #allocation3 [shape = 'u8[131072]{0}', space=vmem, size = 0x20000, scoped, tag = 'input window, operand 0, single buffered']
    #allocation4 [shape = 's32[1]{0}', space=sflag, size = 0x4, scoped, tag = 'scoped memory for tpu_custom_call.1']
    #allocation5 [shape = 's32[1]{0}', space=sflag, size = 0x4, scoped, tag = 'scoped memory for tpu_custom_call.1']
    #allocation6 [shape = 'u8[32768]{0}', space=vmem, size = 0x8000, scoped, tag = 'input window, operand 1, single buffered']
    #allocation7 [shape = 's32[1]{0}', space=sflag, size = 0x4, scoped, tag = 'scoped memory for tpu_custom_call.1']
    #allocation8 [shape = 'u8[32768]{0}', space=vmem, size = 0x8000, scoped, tag = 'input window, operand 3, single buffered']
    #allocation9 [shape = 'u8[1024]{0}', space=vmem, size = 0x400, scoped, tag = 'output window, operand 0, single buffered']
    %10 = vsyncpa [#allocation4], 0
    %11 = vsyncpa [#allocation7], 0
    %12 = vsyncpa [#allocation5], 0
    // Predicated region
    $region2: #{tpu_custom_call.1} parent=1 // pred_check
      _
    $region3: #{tpu_custom_call.1} parent=1 // pred_check_branch
      %14 = sbr.rel (0) target = $region5
    $region4: #{tpu_custom_call.1} parent=1 // pred_region
      %s16 = ssub.s32 4096, 4096
      %17 = vsyncadd [#allocation4], %s16
      %s18 = sshll.u32 [#allocation3], 4
      %s19 = int_to_ptr.vmem [resolvable:$true] %s18
      %24 = dma.hbm_to_vmem [thread:$0]  %s0, 4096, %s19, [#allocation4], 64, 64, 4
    $region5: #{tpu_custom_call.1} parent=1 // pred_fallthru
      _
    // Predicated region
    $region6: #{tpu_custom_call.1} parent=1 // pred_check
      _
    $region7: #{tpu_custom_call.1} parent=1 // pred_check_branch
      %26 = sbr.rel (0) target = $region9
    $region8: #{tpu_custom_call.1} parent=1 // pred_region
      %s28 = ssub.s32 1024, 1024
      %29 = vsyncadd [#allocation7], %s28
      %s30 = sshll.u32 [#allocation6], 4
      %s31 = int_to_ptr.vmem [resolvable:$true] %s30
      %36 = dma.hbm_to_vmem [thread:$0]  %s1, 1024, %s31, [#allocation7], 64, 64, 4
    $region9: #{tpu_custom_call.1} parent=1 // pred_fallthru
      _
    // Predicated region
    $region10: #{tpu_custom_call.1} parent=1 // pred_check
      _
    $region11: #{tpu_custom_call.1} parent=1 // pred_check_branch
      %38 = sbr.rel (0) target = $region13
    $region12: #{tpu_custom_call.1} parent=1 // pred_region
      _
    $region13: #{tpu_custom_call.1} parent=1 // pred_fallthru
      _
    // Predicated region
    $region14: #{tpu_custom_call.1} parent=1 // pred_check
      _
    $region15: #{tpu_custom_call.1} parent=1 // pred_check_branch
      %40 = sbr.rel (0) target = $region17
    $region16: #{tpu_custom_call.1} parent=1 // pred_region
      %s42 = ssub.s32 1024, 1024
      %43 = vsyncadd [#allocation7], %s42
      %s44 = sshll.u32 [#allocation8], 4
      %s45 = int_to_ptr.vmem [resolvable:$true] %s44
      %50 = dma.hbm_to_vmem [thread:$0]  %s3, 1024, %s45, [#allocation7], 64, 64, 4
    $region17: #{tpu_custom_call.1} parent=1 // pred_fallthru
      _
    // Predicated region
    $region18: #{tpu_custom_call.1} parent=1 // pred_check
      _
    $region19: #{tpu_custom_call.1} parent=1 // pred_check_branch
      %52 = sbr.rel (0) target = $region21
    $region20: #{tpu_custom_call.1} parent=1 // pred_region
      _
    $region21: #{tpu_custom_call.1} parent=1 // pred_fallthru
      _
    // Predicated region
    $region22: #{tpu_custom_call.1} parent=1 // pred_check
      _
    $region23: #{tpu_custom_call.1} parent=1 // pred_check_branch
      %54 = sbr.rel (0) target = $region25
    $region24: #{tpu_custom_call.1} parent=1 // pred_region
      %55 = dma.done [#allocation4], 4096
    $region25: #{tpu_custom_call.1} parent=1 // pred_fallthru
      _
    // Predicated region
    $region26: #{tpu_custom_call.1} parent=1 // pred_check
      _
    $region27: #{tpu_custom_call.1} parent=1 // pred_check_branch
      %57 = sbr.rel (0) target = $region29
    $region28: #{tpu_custom_call.1} parent=1 // pred_region
      %58 = dma.done [#allocation7], 1024
    $region29: #{tpu_custom_call.1} parent=1 // pred_fallthru
      _
    // Predicated region
    $region30: #{tpu_custom_call.1} parent=1 // pred_check
      _
    $region31: #{tpu_custom_call.1} parent=1 // pred_check_branch
      %60 = sbr.rel (0) target = $region33
    $region32: #{tpu_custom_call.1} parent=1 // pred_region
      %61 = dma.done [#allocation7], 1024
    $region33: #{tpu_custom_call.1} parent=1 // pred_fallthru
      _
    %p63 = scmp.eq.s32.totalorder 0, 0
    // Predicated region
    $region34: #{tpu_custom_call.1} parent=1 // pred_check
      %p64 = pneg %p63
    $region35: #{tpu_custom_call.1} parent=1 // pred_check_branch
      %66 = sbr.rel (%p64) target = $region37
    $region36: #{tpu_custom_call.1} parent=1 // pred_region
      %67 = vst [vmem:[#allocation2] sm:$0x3] 0.0
    $region37: #{tpu_custom_call.1} parent=1 // pred_fallthru
      _
    %v68 = vld [vmem:[#allocation3] sm:$0xf]
    %v69 = vld [vmem:[#allocation3 + $0x4] sm:$0xf]
    %v70 = vld [vmem:[#allocation3 + $0x8] sm:$0xf]
    %v71 = vld [vmem:[#allocation3 + $0xc] sm:$0xf]
    %v72 = vld [vmem:[#allocation3 + $0x10] sm:$0xf]
    %v73 = vld [vmem:[#allocation3 + $0x14] sm:$0xf]
    %v74 = vld [vmem:[#allocation3 + $0x18] sm:$0xf]
    %v75 = vld [vmem:[#allocation3 + $0x1c] sm:$0xf]
    %v76 = vld [vmem:[#allocation3 + $0x20] sm:$0xf]
    %v77 = vld [vmem:[#allocation3 + $0x24] sm:$0xf]
    %v78 = vld [vmem:[#allocation3 + $0x28] sm:$0xf]
    %v79 = vld [vmem:[#allocation3 + $0x2c] sm:$0xf]
    %v80 = vld [vmem:[#allocation3 + $0x30] sm:$0xf]
    %v81 = vld [vmem:[#allocation3 + $0x34] sm:$0xf]
    %v82 = vld [vmem:[#allocation3 + $0x38] sm:$0xf]
    %v83 = vld [vmem:[#allocation3 + $0x3c] sm:$0xf]
    %v84 = vld [vmem:[#allocation3 + $0x40] sm:$0xf]
    %v85 = vld [vmem:[#allocation3 + $0x44] sm:$0xf]
    %v86 = vld [vmem:[#allocation3 + $0x48] sm:$0xf]
    %v87 = vld [vmem:[#allocation3 + $0x4c] sm:$0xf]
    %v88 = vld [vmem:[#allocation3 + $0x50] sm:$0xf]
    %v89 = vld [vmem:[#allocation3 + $0x54] sm:$0xf]
    %v90 = vld [vmem:[#allocation3 + $0x58] sm:$0xf]
    %v91 = vld [vmem:[#allocation3 + $0x5c] sm:$0xf]
    %v92 = vld [vmem:[#allocation3 + $0x60] sm:$0xf]
    %v93 = vld [vmem:[#allocation3 + $0x64] sm:$0xf]
    %v94 = vld [vmem:[#allocation3 + $0x68] sm:$0xf]
    %v95 = vld [vmem:[#allocation3 + $0x6c] sm:$0xf]
    %v96 = vld [vmem:[#allocation3 + $0x70] sm:$0xf]
    %v97 = vld [vmem:[#allocation3 + $0x74] sm:$0xf]
    %v98 = vld [vmem:[#allocation3 + $0x78] sm:$0xf]
    %v99 = vld [vmem:[#allocation3 + $0x7c] sm:$0xf]
    %v100 = vld [vmem:[#allocation3 + $0x80] sm:$0xf]
    %v101 = vld [vmem:[#allocation3 + $0x84] sm:$0xf]
    %v102 = vld [vmem:[#allocation3 + $0x88] sm:$0xf]
    %v103 = vld [vmem:[#allocation3 + $0x8c] sm:$0xf]
    %v104 = vld [vmem:[#allocation3 + $0x90] sm:$0xf]
    %v105 = vld [vmem:[#allocation3 + $0x94] sm:$0xf]
    %v106 = vld [vmem:[#allocation3 + $0x98] sm:$0xf]
    %v107 = vld [vmem:[#allocation3 + $0x9c] sm:$0xf]
    %v108 = vld [vmem:[#allocation3 + $0xa0] sm:$0xf]
    %v109 = vld [vmem:[#allocation3 + $0xa4] sm:$0xf]
    %v110 = vld [vmem:[#allocation3 + $0xa8] sm:$0xf]
    %v111 = vld [vmem:[#allocation3 + $0xac] sm:$0xf]
    %v112 = vld [vmem:[#allocation3 + $0xb0] sm:$0xf]
    %v113 = vld [vmem:[#allocation3 + $0xb4] sm:$0xf]
    %v114 = vld [vmem:[#allocation3 + $0xb8] sm:$0xf]
    %v115 = vld [vmem:[#allocation3 + $0xbc] sm:$0xf]
    %v116 = vld [vmem:[#allocation3 + $0xc0] sm:$0xf]
    %v117 = vld [vmem:[#allocation3 + $0xc4] sm:$0xf]
    %v118 = vld [vmem:[#allocation3 + $0xc8] sm:$0xf]
    %v119 = vld [vmem:[#allocation3 + $0xcc] sm:$0xf]
    %v120 = vld [vmem:[#allocation3 + $0xd0] sm:$0xf]
    %v121 = vld [vmem:[#allocation3 + $0xd4] sm:$0xf]
    %v122 = vld [vmem:[#allocation3 + $0xd8] sm:$0xf]
    %v123 = vld [vmem:[#allocation3 + $0xdc] sm:$0xf]
    %v124 = vld [vmem:[#allocation3 + $0xe0] sm:$0xf]
    %v125 = vld [vmem:[#allocation3 + $0xe4] sm:$0xf]
    %v126 = vld [vmem:[#allocation3 + $0xe8] sm:$0xf]
    %v127 = vld [vmem:[#allocation3 + $0xec] sm:$0xf]
    %v128 = vld [vmem:[#allocation3 + $0xf0] sm:$0xf]
    %v129 = vld [vmem:[#allocation3 + $0xf4] sm:$0xf]
    %v130 = vld [vmem:[#allocation3 + $0xf8] sm:$0xf]
    %v131 = vld [vmem:[#allocation3 + $0xfc] sm:$0xf]
    %v132 = vld [vmem:[#allocation6] sm:$0xf]
    %v133 = vld [vmem:[#allocation6 + $0x4] sm:$0xf]
    %v134 = vld [vmem:[#allocation6 + $0x8] sm:$0xf]
    %v135 = vld [vmem:[#allocation6 + $0xc] sm:$0xf]
    %v136 = vld [vmem:[#allocation6 + $0x10] sm:$0xf]
    %v137 = vld [vmem:[#allocation6 + $0x14] sm:$0xf]
    %v138 = vld [vmem:[#allocation6 + $0x18] sm:$0xf]
    %v139 = vld [vmem:[#allocation6 + $0x1c] sm:$0xf]
    %v140 = vld [vmem:[#allocation6 + $0x20] sm:$0xf]
    %v141 = vld [vmem:[#allocation6 + $0x24] sm:$0xf]
    %v142 = vld [vmem:[#allocation6 + $0x28] sm:$0xf]
    %v143 = vld [vmem:[#allocation6 + $0x2c] sm:$0xf]
    %v144 = vld [vmem:[#allocation6 + $0x30] sm:$0xf]
    %v145 = vld [vmem:[#allocation6 + $0x34] sm:$0xf]
    %v146 = vld [vmem:[#allocation6 + $0x38] sm:$0xf]
    %v147 = vld [vmem:[#allocation6 + $0x3c] sm:$0xf]
    %v148 = vld [vmem:[%s2] sm:$0x1]
    %v150 = vlaneseq
    %v151 = vshrl.u32 %v150, 7
    %v152 = vsub.s32 0, %v151
    %v153 = vrot.slane %v148, %v152
    %v219 = vunpack.c.l.b16 %v68
    %v220 = vunpack.c.l.b16 %v69
    %v221 = vunpack.c.l.b16 %v70
    %v222 = vunpack.c.l.b16 %v71
    %v223 = vunpack.c.l.b16 %v72
    %v224 = vunpack.c.l.b16 %v73
    %v225 = vunpack.c.l.b16 %v74
    %v226 = vunpack.c.l.b16 %v75
    %v227 = vunpack.c.l.b16 %v76
    %v228 = vunpack.c.l.b16 %v77
    %v229 = vunpack.c.l.b16 %v78
    %v230 = vunpack.c.l.b16 %v79
    %v231 = vunpack.c.l.b16 %v80
    %v232 = vunpack.c.l.b16 %v81
    %v233 = vunpack.c.l.b16 %v82
    %v234 = vunpack.c.l.b16 %v83
    %v235 = vunpack.c.l.b16 %v84
    %v236 = vunpack.c.l.b16 %v85
    %v237 = vunpack.c.l.b16 %v86
    %v238 = vunpack.c.l.b16 %v87
    %v239 = vunpack.c.l.b16 %v88
    %v240 = vunpack.c.l.b16 %v89
    %v241 = vunpack.c.l.b16 %v90
    %v242 = vunpack.c.l.b16 %v91
    %v243 = vunpack.c.l.b16 %v92
    %v244 = vunpack.c.l.b16 %v93
    %v245 = vunpack.c.l.b16 %v94
    %v246 = vunpack.c.l.b16 %v95
    %v247 = vunpack.c.l.b16 %v96
    %v248 = vunpack.c.l.b16 %v97
    %v249 = vunpack.c.l.b16 %v98
    %v250 = vunpack.c.l.b16 %v99
    %v251 = vunpack.c.l.b16 %v100
    %v252 = vunpack.c.l.b16 %v101
    %v253 = vunpack.c.l.b16 %v102
    %v254 = vunpack.c.l.b16 %v103
    %v255 = vunpack.c.l.b16 %v104
    %v256 = vunpack.c.l.b16 %v105
    %v257 = vunpack.c.l.b16 %v106
    %v258 = vunpack.c.l.b16 %v107
    %v259 = vunpack.c.l.b16 %v108
    %v260 = vunpack.c.l.b16 %v109
    %v261 = vunpack.c.l.b16 %v110
    %v262 = vunpack.c.l.b16 %v111
    %v263 = vunpack.c.l.b16 %v112
    %v264 = vunpack.c.l.b16 %v113
    %v265 = vunpack.c.l.b16 %v114
    %v266 = vunpack.c.l.b16 %v115
    %v267 = vunpack.c.l.b16 %v116
    %v268 = vunpack.c.l.b16 %v117
    %v269 = vunpack.c.l.b16 %v118
    %v270 = vunpack.c.l.b16 %v119
    %v271 = vunpack.c.l.b16 %v120
    %v272 = vunpack.c.l.b16 %v121
    %v273 = vunpack.c.l.b16 %v122
    %v274 = vunpack.c.l.b16 %v123
    %v275 = vunpack.c.l.b16 %v124
    %v276 = vunpack.c.l.b16 %v125
    %v277 = vunpack.c.l.b16 %v126
    %v278 = vunpack.c.l.b16 %v127
    %v279 = vunpack.c.l.b16 %v128
    %v280 = vunpack.c.l.b16 %v129
    %v281 = vunpack.c.l.b16 %v130
    %v282 = vunpack.c.l.b16 %v131
    %v283 = vpack.c.b16 %v220, %v219
    %v284 = vpack.c.b16 %v222, %v221
    %v285 = vpack.c.b16 %v224, %v223
    %v286 = vpack.c.b16 %v226, %v225
    %v287 = vpack.c.b16 %v228, %v227
    %v288 = vpack.c.b16 %v230, %v229
    %v289 = vpack.c.b16 %v232, %v231
    %v290 = vpack.c.b16 %v234, %v233
    %v291 = vpack.c.b16 %v236, %v235
    %v292 = vpack.c.b16 %v238, %v237
    %v293 = vpack.c.b16 %v240, %v239
    %v294 = vpack.c.b16 %v242, %v241
    %v295 = vpack.c.b16 %v244, %v243
    %v296 = vpack.c.b16 %v246, %v245
    %v297 = vpack.c.b16 %v248, %v247
    %v298 = vpack.c.b16 %v250, %v249
    %v299 = vpack.c.b16 %v252, %v251
    %v300 = vpack.c.b16 %v254, %v253
    %v301 = vpack.c.b16 %v256, %v255
    %v302 = vpack.c.b16 %v258, %v257
    %v303 = vpack.c.b16 %v260, %v259
    %v304 = vpack.c.b16 %v262, %v261
    %v305 = vpack.c.b16 %v264, %v263
    %v306 = vpack.c.b16 %v266, %v265
    %v307 = vpack.c.b16 %v268, %v267
    %v308 = vpack.c.b16 %v270, %v269
    %v309 = vpack.c.b16 %v272, %v271
    %v310 = vpack.c.b16 %v274, %v273
    %v311 = vpack.c.b16 %v276, %v275
    %v312 = vpack.c.b16 %v278, %v277
    %v313 = vpack.c.b16 %v280, %v279
    %v314 = vpack.c.b16 %v282, %v281
    %v363 = vunpack.c.l.b16 %v132
    %v364 = vunpack.c.l.b16 %v133
    %v365 = vunpack.c.l.b16 %v134
    %v366 = vunpack.c.l.b16 %v135
    %v367 = vunpack.c.l.b16 %v136
    %v368 = vunpack.c.l.b16 %v137
    %v369 = vunpack.c.l.b16 %v138
    %v370 = vunpack.c.l.b16 %v139
    %v371 = vunpack.c.l.b16 %v140
    %v372 = vunpack.c.l.b16 %v141
    %v373 = vunpack.c.l.b16 %v142
    %v374 = vunpack.c.l.b16 %v143
    %v375 = vunpack.c.l.b16 %v144
    %v376 = vunpack.c.l.b16 %v145
    %v377 = vunpack.c.l.b16 %v146
    %v378 = vunpack.c.l.b16 %v147
    %v379 = vpack.c.b16 %v364, %v363
    %v380 = vpack.c.b16 %v366, %v365
    %v381 = vpack.c.b16 %v368, %v367
    %v382 = vpack.c.b16 %v370, %v369
    %v383 = vpack.c.b16 %v372, %v371
    %v384 = vpack.c.b16 %v374, %v373
    %v385 = vpack.c.b16 %v376, %v375
    %v386 = vpack.c.b16 %v378, %v377
    %395 = vmatprep.subr.bf16.mxu0 0
    %396 = vmatpush1.bf16.msra.mxu0 %v379
    %397 = vmatprep.subr.bf16.mxu0 0
    %398 = vmatpush1.bf16.msra.mxu0 %v380
    %399 = vmatprep.subr.bf16.mxu0 0
    %400 = vmatpush1.bf16.msra.mxu0 %v381
    %401 = vmatprep.subr.bf16.mxu0 0
    %402 = vmatpush1.bf16.msra.mxu0 %v382
    %403 = vmatprep.subr.bf16.mxu0 0
    %404 = vmatpush1.bf16.msra.mxu0 %v383
    %405 = vmatprep.subr.bf16.mxu0 0
    %406 = vmatpush1.bf16.msra.mxu0 %v384
    %407 = vmatprep.subr.bf16.mxu0 0
    %408 = vmatpush1.bf16.msra.mxu0 %v385
    %409 = vmatprep.subr.bf16.mxu0 0
    %410 = vmatpush1.bf16.msra.mxu0 %v386
    %411 = vmatprep.subr.bf16.mxu0 0
    %412 = vmatpush1.bf16.msra.mxu0 0
    %413 = vmatprep.subr.bf16.mxu0 0
    %414 = vmatpush1.bf16.msra.mxu0 0
    %415 = vmatprep.subr.bf16.mxu0 0
    %416 = vmatpush1.bf16.msra.mxu0 0
    %417 = vmatprep.subr.bf16.mxu0 0
    %418 = vmatpush1.bf16.msra.mxu0 0
    %419 = vmatprep.subr.bf16.mxu0 0
    %420 = vmatpush1.bf16.msra.mxu0 0
    %421 = vmatprep.subr.bf16.mxu0 0
    %422 = vmatpush1.bf16.msra.mxu0 0
    %423 = vmatprep.subr.bf16.mxu0 0
    %424 = vmatpush1.bf16.msra.mxu0 0
    %425 = vmatprep.subr.bf16.mxu0 0
    %426 = vmatpush1.bf16.msra.mxu0 0
    %427 = vmatprep.mubr.bf16.mxu0 0
    %428 = vmatmul.mubr.bf16.gmra.mrb[0].mxu0 %v283
    %v429 = vpop.f32.mrb[0].mxu0
    %v430 = vadd.f32 %v153, %v429
    %v431 = vpop.f32.mrb[0].mxu0
    %v432 = vpop.f32.mrb[0].mxu0
    %v433 = vadd.f32 %v153, %v432
    %v434 = vpop.f32.mrb[0].mxu0
    %435 = vmatprep.mubr.bf16.mxu0 0
    %436 = vmatmul.mubr.bf16.gmra.mrb[0].mxu0 %v284
    %v437 = vpop.f32.mrb[0].mxu0
    %v438 = vadd.f32 %v153, %v437
    %v439 = vpop.f32.mrb[0].mxu0
    %v440 = vpop.f32.mrb[0].mxu0
    %v441 = vadd.f32 %v153, %v440
    %v442 = vpop.f32.mrb[0].mxu0
    %443 = vmatprep.mubr.bf16.mxu0 0
    %444 = vmatmul.mubr.bf16.gmra.mrb[0].mxu0 %v285
    %v445 = vpop.f32.mrb[0].mxu0
    %v446 = vadd.f32 %v153, %v445
    %v447 = vpop.f32.mrb[0].mxu0
    %v448 = vpop.f32.mrb[0].mxu0
    %v449 = vadd.f32 %v153, %v448
    %v450 = vpop.f32.mrb[0].mxu0
    %451 = vmatprep.mubr.bf16.mxu0 0
    %452 = vmatmul.mubr.bf16.gmra.mrb[0].mxu0 %v286
    %v453 = vpop.f32.mrb[0].mxu0
    %v454 = vadd.f32 %v153, %v453
    %v455 = vpop.f32.mrb[0].mxu0
    %v456 = vpop.f32.mrb[0].mxu0
    %v457 = vadd.f32 %v153, %v456
    %v458 = vpop.f32.mrb[0].mxu0
    %459 = vmatprep.mubr.bf16.mxu0 0
    %460 = vmatmul.mubr.bf16.gmra.mrb[0].mxu0 %v287
    %v461 = vpop.f32.mrb[0].mxu0
    %v462 = vadd.f32 %v153, %v461
    %v463 = vpop.f32.mrb[0].mxu0
    %v464 = vpop.f32.mrb[0].mxu0
    %v465 = vadd.f32 %v153, %v464
    %v466 = vpop.f32.mrb[0].mxu0
    %467 = vmatprep.mubr.bf16.mxu0 0
    %468 = vmatmul.mubr.bf16.gmra.mrb[0].mxu0 %v288
    %v469 = vpop.f32.mrb[0].mxu0
    %v470 = vadd.f32 %v153, %v469
    %v471 = vpop.f32.mrb[0].mxu0
    %v472 = vpop.f32.mrb[0].mxu0
    %v473 = vadd.f32 %v153, %v472
    %v474 = vpop.f32.mrb[0].mxu0
    %475 = vmatprep.mubr.bf16.mxu0 0
    %476 = vmatmul.mubr.bf16.gmra.mrb[0].mxu0 %v289
    %v477 = vpop.f32.mrb[0].mxu0
    %v478 = vadd.f32 %v153, %v477
    %v479 = vpop.f32.mrb[0].mxu0
    %v480 = vpop.f32.mrb[0].mxu0
    %v481 = vadd.f32 %v153, %v480
    %v482 = vpop.f32.mrb[0].mxu0
    %483 = vmatprep.mubr.bf16.mxu0 0
    %484 = vmatmul.mubr.bf16.gmra.mrb[0].mxu0 %v290
    %v485 = vpop.f32.mrb[0].mxu0
    %v486 = vadd.f32 %v153, %v485
    %v487 = vpop.f32.mrb[0].mxu0
    %v488 = vpop.f32.mrb[0].mxu0
    %v489 = vadd.f32 %v153, %v488
    %v490 = vpop.f32.mrb[0].mxu0
    %491 = vmatprep.mubr.bf16.mxu0 0
    %492 = vmatmul.mubr.bf16.gmra.mrb[0].mxu0 %v291
    %v493 = vpop.f32.mrb[0].mxu0
    %v494 = vadd.f32 %v153, %v493
    %v495 = vpop.f32.mrb[0].mxu0
    %v496 = vpop.f32.mrb[0].mxu0
    %v497 = vadd.f32 %v153, %v496
    %v498 = vpop.f32.mrb[0].mxu0
    %499 = vmatprep.mubr.bf16.mxu0 0
    %500 = vmatmul.mubr.bf16.gmra.mrb[0].mxu0 %v292
    %v501 = vpop.f32.mrb[0].mxu0
    %v502 = vadd.f32 %v153, %v501
    %v503 = vpop.f32.mrb[0].mxu0
    %v504 = vpop.f32.mrb[0].mxu0
    %v505 = vadd.f32 %v153, %v504
    %v506 = vpop.f32.mrb[0].mxu0
    %507 = vmatprep.mubr.bf16.mxu0 0
    %508 = vmatmul.mubr.bf16.gmra.mrb[0].mxu0 %v293
    %v509 = vpop.f32.mrb[0].mxu0
    %v510 = vadd.f32 %v153, %v509
    %v511 = vpop.f32.mrb[0].mxu0
    %v512 = vpop.f32.mrb[0].mxu0
    %v513 = vadd.f32 %v153, %v512
    %v514 = vpop.f32.mrb[0].mxu0
    %515 = vmatprep.mubr.bf16.mxu0 0
    %516 = vmatmul.mubr.bf16.gmra.mrb[0].mxu0 %v294
    %v517 = vpop.f32.mrb[0].mxu0
    %v518 = vadd.f32 %v153, %v517
    %v519 = vpop.f32.mrb[0].mxu0
    %v520 = vpop.f32.mrb[0].mxu0
    %v521 = vadd.f32 %v153, %v520
    %v522 = vpop.f32.mrb[0].mxu0
    %523 = vmatprep.mubr.bf16.mxu0 0
    %524 = vmatmul.mubr.bf16.gmra.mrb[0].mxu0 %v295
    %v525 = vpop.f32.mrb[0].mxu0
    %v526 = vadd.f32 %v153, %v525
    %v527 = vpop.f32.mrb[0].mxu0
    %v528 = vpop.f32.mrb[0].mxu0
    %v529 = vadd.f32 %v153, %v528
    %v530 = vpop.f32.mrb[0].mxu0
    %531 = vmatprep.mubr.bf16.mxu0 0
    %532 = vmatmul.mubr.bf16.gmra.mrb[0].mxu0 %v296
    %v533 = vpop.f32.mrb[0].mxu0
    %v534 = vadd.f32 %v153, %v533
    %v535 = vpop.f32.mrb[0].mxu0
    %v536 = vpop.f32.mrb[0].mxu0
    %v537 = vadd.f32 %v153, %v536
    %v538 = vpop.f32.mrb[0].mxu0
    %539 = vmatprep.mubr.bf16.mxu0 0
    %540 = vmatmul.mubr.bf16.gmra.mrb[0].mxu0 %v297
    %v541 = vpop.f32.mrb[0].mxu0
    %v542 = vadd.f32 %v153, %v541
    %v543 = vpop.f32.mrb[0].mxu0
    %v544 = vpop.f32.mrb[0].mxu0
    %v545 = vadd.f32 %v153, %v544
    %v546 = vpop.f32.mrb[0].mxu0
    %547 = vmatprep.mubr.bf16.mxu0 0
    %548 = vmatmul.mubr.bf16.gmra.mrb[0].mxu0 %v298
    %v549 = vpop.f32.mrb[0].mxu0
    %v550 = vadd.f32 %v153, %v549
    %v551 = vpop.f32.mrb[0].mxu0
    %v552 = vpop.f32.mrb[0].mxu0
    %v553 = vadd.f32 %v153, %v552
    %v554 = vpop.f32.mrb[0].mxu0
    %555 = vmatprep.mubr.bf16.mxu0 0
    %556 = vmatmul.mubr.bf16.gmra.mrb[0].mxu0 %v299
    %v557 = vpop.f32.mrb[0].mxu0
    %v558 = vadd.f32 %v153, %v557
    %v559 = vpop.f32.mrb[0].mxu0
    %v560 = vpop.f32.mrb[0].mxu0
    %v561 = vadd.f32 %v153, %v560
    %v562 = vpop.f32.mrb[0].mxu0
    %563 = vmatprep.mubr.bf16.mxu0 0
    %564 = vmatmul.mubr.bf16.gmra.mrb[0].mxu0 %v300
    %v565 = vpop.f32.mrb[0].mxu0
    %v566 = vadd.f32 %v153, %v565
    %v567 = vpop.f32.mrb[0].mxu0
    %v568 = vpop.f32.mrb[0].mxu0
    %v569 = vadd.f32 %v153, %v568
    %v570 = vpop.f32.mrb[0].mxu0
    %571 = vmatprep.mubr.bf16.mxu0 0
    %572 = vmatmul.mubr.bf16.gmra.mrb[0].mxu0 %v301
    %v573 = vpop.f32.mrb[0].mxu0
    %v574 = vadd.f32 %v153, %v573
    %v575 = vpop.f32.mrb[0].mxu0
    %v576 = vpop.f32.mrb[0].mxu0
    %v577 = vadd.f32 %v153, %v576
    %v578 = vpop.f32.mrb[0].mxu0
    %579 = vmatprep.mubr.bf16.mxu0 0
    %580 = vmatmul.mubr.bf16.gmra.mrb[0].mxu0 %v302
    %v581 = vpop.f32.mrb[0].mxu0
    %v582 = vadd.f32 %v153, %v581
    %v583 = vpop.f32.mrb[0].mxu0
    %v584 = vpop.f32.mrb[0].mxu0
    %v585 = vadd.f32 %v153, %v584
    %v586 = vpop.f32.mrb[0].mxu0
    %587 = vmatprep.mubr.bf16.mxu0 0
    %588 = vmatmul.mubr.bf16.gmra.mrb[0].mxu0 %v303
    %v589 = vpop.f32.mrb[0].mxu0
    %v590 = vadd.f32 %v153, %v589
    %v591 = vpop.f32.mrb[0].mxu0
    %v592 = vpop.f32.mrb[0].mxu0
    %v593 = vadd.f32 %v153, %v592
    %v594 = vpop.f32.mrb[0].mxu0
    %595 = vmatprep.mubr.bf16.mxu0 0
    %596 = vmatmul.mubr.bf16.gmra.mrb[0].mxu0 %v304
    %v597 = vpop.f32.mrb[0].mxu0
    %v598 = vadd.f32 %v153, %v597
    %v599 = vpop.f32.mrb[0].mxu0
    %v600 = vpop.f32.mrb[0].mxu0
    %v601 = vadd.f32 %v153, %v600
    %v602 = vpop.f32.mrb[0].mxu0
    %603 = vmatprep.mubr.bf16.mxu0 0
    %604 = vmatmul.mubr.bf16.gmra.mrb[0].mxu0 %v305
    %v605 = vpop.f32.mrb[0].mxu0
    %v606 = vadd.f32 %v153, %v605
    %v607 = vpop.f32.mrb[0].mxu0
    %v608 = vpop.f32.mrb[0].mxu0
    %v609 = vadd.f32 %v153, %v608
    %v610 = vpop.f32.mrb[0].mxu0
    %611 = vmatprep.mubr.bf16.mxu0 0
    %612 = vmatmul.mubr.bf16.gmra.mrb[0].mxu0 %v306
    %v613 = vpop.f32.mrb[0].mxu0
    %v614 = vadd.f32 %v153, %v613
    %v615 = vpop.f32.mrb[0].mxu0
    %v616 = vpop.f32.mrb[0].mxu0
    %v617 = vadd.f32 %v153, %v616
    %v618 = vpop.f32.mrb[0].mxu0
    %619 = vmatprep.mubr.bf16.mxu0 0
    %620 = vmatmul.mubr.bf16.gmra.mrb[0].mxu0 %v307
    %v621 = vpop.f32.mrb[0].mxu0
    %v622 = vadd.f32 %v153, %v621
    %v623 = vpop.f32.mrb[0].mxu0
    %v624 = vpop.f32.mrb[0].mxu0
    %v625 = vadd.f32 %v153, %v624
    %v626 = vpop.f32.mrb[0].mxu0
    %627 = vmatprep.mubr.bf16.mxu0 0
    %628 = vmatmul.mubr.bf16.gmra.mrb[0].mxu0 %v308
    %v629 = vpop.f32.mrb[0].mxu0
    %v630 = vadd.f32 %v153, %v629
    %v631 = vpop.f32.mrb[0].mxu0
    %v632 = vpop.f32.mrb[0].mxu0
    %v633 = vadd.f32 %v153, %v632
    %v634 = vpop.f32.mrb[0].mxu0
    %635 = vmatprep.mubr.bf16.mxu0 0
    %636 = vmatmul.mubr.bf16.gmra.mrb[0].mxu0 %v309
    %v637 = vpop.f32.mrb[0].mxu0
    %v638 = vadd.f32 %v153, %v637
    %v639 = vpop.f32.mrb[0].mxu0
    %v640 = vpop.f32.mrb[0].mxu0
    %v641 = vadd.f32 %v153, %v640
    %v642 = vpop.f32.mrb[0].mxu0
    %643 = vmatprep.mubr.bf16.mxu0 0
    %644 = vmatmul.mubr.bf16.gmra.mrb[0].mxu0 %v310
    %v645 = vpop.f32.mrb[0].mxu0
    %v646 = vadd.f32 %v153, %v645
    %v647 = vpop.f32.mrb[0].mxu0
    %v648 = vpop.f32.mrb[0].mxu0
    %v649 = vadd.f32 %v153, %v648
    %v650 = vpop.f32.mrb[0].mxu0
    %651 = vmatprep.mubr.bf16.mxu0 0
    %652 = vmatmul.mubr.bf16.gmra.mrb[0].mxu0 %v311
    %v653 = vpop.f32.mrb[0].mxu0
    %v654 = vadd.f32 %v153, %v653
    %v655 = vpop.f32.mrb[0].mxu0
    %v656 = vpop.f32.mrb[0].mxu0
    %v657 = vadd.f32 %v153, %v656
    %v658 = vpop.f32.mrb[0].mxu0
    %659 = vmatprep.mubr.bf16.mxu0 0
    %660 = vmatmul.mubr.bf16.gmra.mrb[0].mxu0 %v312
    %v661 = vpop.f32.mrb[0].mxu0
    %v662 = vadd.f32 %v153, %v661
    %v663 = vpop.f32.mrb[0].mxu0
    %v664 = vpop.f32.mrb[0].mxu0
    %v665 = vadd.f32 %v153, %v664
    %v666 = vpop.f32.mrb[0].mxu0
    %667 = vmatprep.mubr.bf16.mxu0 0
    %668 = vmatmul.mubr.bf16.gmra.mrb[0].mxu0 %v313
    %v669 = vpop.f32.mrb[0].mxu0
    %v670 = vadd.f32 %v153, %v669
    %v671 = vpop.f32.mrb[0].mxu0
    %v672 = vpop.f32.mrb[0].mxu0
    %v673 = vadd.f32 %v153, %v672
    %v674 = vpop.f32.mrb[0].mxu0
    %675 = vmatprep.mubr.bf16.mxu0 0
    %676 = vmatmul.mubr.bf16.gmra.mrb[0].mxu0 %v314
    %v677 = vpop.f32.mrb[0].mxu0
    %v678 = vadd.f32 %v153, %v677
    %v679 = vpop.f32.mrb[0].mxu0
    %v680 = vpop.f32.mrb[0].mxu0
    %v681 = vadd.f32 %v153, %v680
    %v682 = vpop.f32.mrb[0].mxu0
    %683 = vdwg.mxu0
    %v684 = vmax.f32 %v430, 0.0
    %v685 = vmax.f32 %v433, 0.0
    %v686 = vmax.f32 %v438, 0.0
    %v687 = vmax.f32 %v441, 0.0
    %v688 = vmax.f32 %v446, 0.0
    %v689 = vmax.f32 %v449, 0.0
    %v690 = vmax.f32 %v454, 0.0
    %v691 = vmax.f32 %v457, 0.0
    %v692 = vmax.f32 %v462, 0.0
    %v693 = vmax.f32 %v465, 0.0
    %v694 = vmax.f32 %v470, 0.0
    %v695 = vmax.f32 %v473, 0.0
    %v696 = vmax.f32 %v478, 0.0
    %v697 = vmax.f32 %v481, 0.0
    %v698 = vmax.f32 %v486, 0.0
    %v699 = vmax.f32 %v489, 0.0
    %v700 = vmax.f32 %v494, 0.0
    %v701 = vmax.f32 %v497, 0.0
    %v702 = vmax.f32 %v502, 0.0
    %v703 = vmax.f32 %v505, 0.0
    %v704 = vmax.f32 %v510, 0.0
    %v705 = vmax.f32 %v513, 0.0
    %v706 = vmax.f32 %v518, 0.0
    %v707 = vmax.f32 %v521, 0.0
    %v708 = vmax.f32 %v526, 0.0
    %v709 = vmax.f32 %v529, 0.0
    %v710 = vmax.f32 %v534, 0.0
    %v711 = vmax.f32 %v537, 0.0
    %v712 = vmax.f32 %v542, 0.0
    %v713 = vmax.f32 %v545, 0.0
    %v714 = vmax.f32 %v550, 0.0
    %v715 = vmax.f32 %v553, 0.0
    %v716 = vmax.f32 %v558, 0.0
    %v717 = vmax.f32 %v561, 0.0
    %v718 = vmax.f32 %v566, 0.0
    %v719 = vmax.f32 %v569, 0.0
    %v720 = vmax.f32 %v574, 0.0
    %v721 = vmax.f32 %v577, 0.0
    %v722 = vmax.f32 %v582, 0.0
    %v723 = vmax.f32 %v585, 0.0
    %v724 = vmax.f32 %v590, 0.0
    %v725 = vmax.f32 %v593, 0.0
    %v726 = vmax.f32 %v598, 0.0
    %v727 = vmax.f32 %v601, 0.0
    %v728 = vmax.f32 %v606, 0.0
    %v729 = vmax.f32 %v609, 0.0
    %v730 = vmax.f32 %v614, 0.0
    %v731 = vmax.f32 %v617, 0.0
    %v732 = vmax.f32 %v622, 0.0
    %v733 = vmax.f32 %v625, 0.0
    %v734 = vmax.f32 %v630, 0.0
    %v735 = vmax.f32 %v633, 0.0
    %v736 = vmax.f32 %v638, 0.0
    %v737 = vmax.f32 %v641, 0.0
    %v738 = vmax.f32 %v646, 0.0
    %v739 = vmax.f32 %v649, 0.0
    %v740 = vmax.f32 %v654, 0.0
    %v741 = vmax.f32 %v657, 0.0
    %v742 = vmax.f32 %v662, 0.0
    %v743 = vmax.f32 %v665, 0.0
    %v744 = vmax.f32 %v670, 0.0
    %v745 = vmax.f32 %v673, 0.0
    %v746 = vmax.f32 %v678, 0.0
    %v747 = vmax.f32 %v681, 0.0
    %v748 = vld [vmem:[#allocation2] sm:$0x3]
    %v749 = vadd.f32 %v684, %v685
    %v750 = vadd.f32 %v749, %v686
    %v751 = vadd.f32 %v750, %v687
    %v752 = vadd.f32 %v751, %v688
    %v753 = vadd.f32 %v752, %v689
    %v754 = vadd.f32 %v753, %v690
    %v755 = vadd.f32 %v754, %v691
    %v756 = vadd.f32 %v755, %v692
    %v757 = vadd.f32 %v756, %v693
    %v758 = vadd.f32 %v757, %v694
    %v759 = vadd.f32 %v758, %v695
    %v760 = vadd.f32 %v759, %v696
    %v761 = vadd.f32 %v760, %v697
    %v762 = vadd.f32 %v761, %v698
    %v763 = vadd.f32 %v762, %v699
    %v764 = vadd.f32 %v763, %v700
    %v765 = vadd.f32 %v764, %v701
    %v766 = vadd.f32 %v765, %v702
    %v767 = vadd.f32 %v766, %v703
    %v768 = vadd.f32 %v767, %v704
    %v769 = vadd.f32 %v768, %v705
    %v770 = vadd.f32 %v769, %v706
    %v771 = vadd.f32 %v770, %v707
    %v772 = vadd.f32 %v771, %v708
    %v773 = vadd.f32 %v772, %v709
    %v774 = vadd.f32 %v773, %v710
    %v775 = vadd.f32 %v774, %v711
    %v776 = vadd.f32 %v775, %v712
    %v777 = vadd.f32 %v776, %v713
    %v778 = vadd.f32 %v777, %v714
    %v779 = vadd.f32 %v778, %v715
    %v780 = vrot.slane %v779, 4
    %v781 = vadd.f32 %v779, %v780
    %v782 = vrot.slane %v781, 2
    %v783 = vadd.f32 %v781, %v782
    %v784 = vrot.slane %v783, 1
    %v785 = vadd.f32 %v783, %v784
    %v786 = vadd.f32 %v716, %v717
    %v787 = vadd.f32 %v786, %v718
    %v788 = vadd.f32 %v787, %v719
    %v789 = vadd.f32 %v788, %v720
    %v790 = vadd.f32 %v789, %v721
    %v791 = vadd.f32 %v790, %v722
    %v792 = vadd.f32 %v791, %v723
    %v793 = vadd.f32 %v792, %v724
    %v794 = vadd.f32 %v793, %v725
    %v795 = vadd.f32 %v794, %v726
    %v796 = vadd.f32 %v795, %v727
    %v797 = vadd.f32 %v796, %v728
    %v798 = vadd.f32 %v797, %v729
    %v799 = vadd.f32 %v798, %v730
    %v800 = vadd.f32 %v799, %v731
    %v801 = vadd.f32 %v800, %v732
    %v802 = vadd.f32 %v801, %v733
    %v803 = vadd.f32 %v802, %v734
    %v804 = vadd.f32 %v803, %v735
    %v805 = vadd.f32 %v804, %v736
    %v806 = vadd.f32 %v805, %v737
    %v807 = vadd.f32 %v806, %v738
    %v808 = vadd.f32 %v807, %v739
    %v809 = vadd.f32 %v808, %v740
    %v810 = vadd.f32 %v809, %v741
    %v811 = vadd.f32 %v810, %v742
    %v812 = vadd.f32 %v811, %v743
    %v813 = vadd.f32 %v812, %v744
    %v814 = vadd.f32 %v813, %v745
    %v815 = vadd.f32 %v814, %v746
    %v816 = vadd.f32 %v815, %v747
    %v817 = vrot.slane %v816, 4
    %v818 = vadd.f32 %v816, %v817
    %v819 = vrot.slane %v818, 2
    %v820 = vadd.f32 %v818, %v819
    %v821 = vrot.slane %v820, 1
    %v822 = vadd.f32 %v820, %v821
    %vm825 = vcmask 1041409
    %v826 = vsel %vm825, %v822, %v785
    %v828 = vadd.f32 %v748, %v826
    %829 = vst [vmem:[#allocation2] sm:$0x3] %v828
    // Predicated region
    $region38: #{tpu_custom_call.1} parent=1 // pred_check
      %p830 = pneg %p63
    $region39: #{tpu_custom_call.1} parent=1 // pred_check_branch
      %832 = sbr.rel (%p830) target = $region41
    $region40: #{tpu_custom_call.1} parent=1 // pred_region
      %v833 = vld [vmem:[#allocation2] sm:$0x3]
      %v834 = vmul.f32 %v833, 0.00390625
      %v835 = vpack.c.bf16 %v834, %v834
      %v836 = vld [vmem:[#allocation8] sm:$0xf]
      %v837 = vld [vmem:[#allocation8 + $0x4] sm:$0xf]
      %v838 = vld [vmem:[#allocation8 + $0x8] sm:$0xf]
      %v839 = vld [vmem:[#allocation8 + $0xc] sm:$0xf]
      %v840 = vld [vmem:[#allocation8 + $0x10] sm:$0xf]
      %v841 = vld [vmem:[#allocation8 + $0x14] sm:$0xf]
      %v842 = vld [vmem:[#allocation8 + $0x18] sm:$0xf]
      %v843 = vld [vmem:[#allocation8 + $0x1c] sm:$0xf]
      %v844 = vld [vmem:[#allocation8 + $0x20] sm:$0xf]
      %v845 = vld [vmem:[#allocation8 + $0x24] sm:$0xf]
      %v846 = vld [vmem:[#allocation8 + $0x28] sm:$0xf]
      %v847 = vld [vmem:[#allocation8 + $0x2c] sm:$0xf]
      %v848 = vld [vmem:[#allocation8 + $0x30] sm:$0xf]
      %v849 = vld [vmem:[#allocation8 + $0x34] sm:$0xf]
      %v850 = vld [vmem:[#allocation8 + $0x38] sm:$0xf]
      %v851 = vld [vmem:[#allocation8 + $0x3c] sm:$0xf]
      %v852 = vld [vmem:[%s4] sm:$0x1]
      %v854 = vlaneseq
      %v855 = vshrl.u32 %v854, 7
      %v856 = vsub.s32 0, %v855
      %v857 = vrot.slane %v852, %v856
      %v875 = vunpack.c.l.b16 %v836
      %v876 = vunpack.c.l.b16 %v837
      %v877 = vunpack.c.l.b16 %v838
      %v878 = vunpack.c.l.b16 %v839
      %v879 = vunpack.c.l.b16 %v840
      %v880 = vunpack.c.l.b16 %v841
      %v881 = vunpack.c.l.b16 %v842
      %v882 = vunpack.c.l.b16 %v843
      %v883 = vunpack.c.l.b16 %v844
      %v884 = vunpack.c.l.b16 %v845
      %v885 = vunpack.c.l.b16 %v846
      %v886 = vunpack.c.l.b16 %v847
      %v887 = vunpack.c.l.b16 %v848
      %v888 = vunpack.c.l.b16 %v849
      %v889 = vunpack.c.l.b16 %v850
      %v890 = vunpack.c.l.b16 %v851
      %v891 = vpack.c.b16 %v876, %v875
      %v892 = vpack.c.b16 %v878, %v877
      %v893 = vpack.c.b16 %v880, %v879
      %v894 = vpack.c.b16 %v882, %v881
      %v895 = vpack.c.b16 %v884, %v883
      %v896 = vpack.c.b16 %v886, %v885
      %v897 = vpack.c.b16 %v888, %v887
      %v898 = vpack.c.b16 %v890, %v889
      %907 = vmatprep.subr.bf16.mxu0 0
      %908 = vmatpush1.bf16.msra.mxu0 %v891
      %909 = vmatprep.subr.bf16.mxu0 0
      %910 = vmatpush1.bf16.msra.mxu0 %v892
      %911 = vmatprep.subr.bf16.mxu0 0
      %912 = vmatpush1.bf16.msra.mxu0 %v893
      %913 = vmatprep.subr.bf16.mxu0 0
      %914 = vmatpush1.bf16.msra.mxu0 %v894
      %915 = vmatprep.subr.bf16.mxu0 0
      %916 = vmatpush1.bf16.msra.mxu0 %v895
      %917 = vmatprep.subr.bf16.mxu0 0
      %918 = vmatpush1.bf16.msra.mxu0 %v896
      %919 = vmatprep.subr.bf16.mxu0 0
      %920 = vmatpush1.bf16.msra.mxu0 %v897
      %921 = vmatprep.subr.bf16.mxu0 0
      %922 = vmatpush1.bf16.msra.mxu0 %v898
      %923 = vmatprep.subr.bf16.mxu0 0
      %924 = vmatpush1.bf16.msra.mxu0 0
      %925 = vmatprep.subr.bf16.mxu0 0
      %926 = vmatpush1.bf16.msra.mxu0 0
      %927 = vmatprep.subr.bf16.mxu0 0
      %928 = vmatpush1.bf16.msra.mxu0 0
      %929 = vmatprep.subr.bf16.mxu0 0
      %930 = vmatpush1.bf16.msra.mxu0 0
      %931 = vmatprep.subr.bf16.mxu0 0
      %932 = vmatpush1.bf16.msra.mxu0 0
      %933 = vmatprep.subr.bf16.mxu0 0
      %934 = vmatpush1.bf16.msra.mxu0 0
      %935 = vmatprep.subr.bf16.mxu0 0
      %936 = vmatpush1.bf16.msra.mxu0 0
      %937 = vmatprep.subr.bf16.mxu0 0
      %938 = vmatpush1.bf16.msra.mxu0 0
      %939 = vmatprep.mubr.bf16.mxu0 0
      %940 = vmatmul.mubr.bf16.gmra.mrb[0].mxu0 %v835
      %v941 = vpop.f32.mrb[0].mxu0
      %v942 = vadd.f32 %v857, %v941
      %v943 = vpop.f32.mrb[0].mxu0
      %v944 = vpop.f32.mrb[0].mxu0
      %v945 = vpop.f32.mrb[0].mxu0
      %946 = vdwg.mxu0
      %947 = vst [vmem:[#allocation9] sm:$0x3] %v942
    $region41: #{tpu_custom_call.1} parent=1 // pred_fallthru
      _
    // Predicated region
    $region42: #{tpu_custom_call.1} parent=1 // pred_check
      _
    $region43: #{tpu_custom_call.1} parent=1 // pred_check_branch
      %949 = sbr.rel (0) target = $region45
    $region44: #{tpu_custom_call.1} parent=1 // pred_region
      %s951 = ssub.s32 32, 32
      %952 = vsyncadd [#allocation5], %s951
      %s954 = sshll.u32 [#allocation9], 4
      %s955 = int_to_ptr.vmem [resolvable:$true] %s954
      %957 = dma.vmem_to_hbm [thread:$0]  %s955, 32, %s5, [#allocation5]
    $region45: #{tpu_custom_call.1} parent=1 // pred_fallthru
      _
    // Predicated region
    $region46: #{tpu_custom_call.1} parent=1 // pred_check
      _
    $region47: #{tpu_custom_call.1} parent=1 // pred_check_branch
      %959 = sbr.rel (0) target = $region49
    $region48: #{tpu_custom_call.1} parent=1 // pred_region
      %960 = dma.done [#allocation5], 32
    $region49: #{tpu_custom_call.1} parent=1 // pred_fallthru
      _
    %961 = vsyncpa [#allocation4], 1
    %962 = vsyncpa [#allocation7], 1
    %963 = vsyncpa [#allocation5], 1

</llo_original>
